<compile_context>
chip_gen: v7x
topology: tpu7x:2x2x1
jax: 0.10.0
libtpu: 0.0.40
codegen_flags: <defaults>
</compile_context>

<pallas_src>
import jax
import jax.numpy as jnp
from jax.experimental import pallas as pl
from jax.experimental.pallas import tpu as pltpu


def _round_up(v, m):
    return (v + m - 1) // m * m


def _dwconv_kernel(x_ref, top_ref, bot_ref, w_ref, b_ref, o_ref, slab_ref):
    # x_ref:    (1, TH, W, Ct)   unpadded center rows of this H tile
    # top_ref:  (1, 1,  W, Ct)   image row just above the tile (clamped at the border)
    # bot_ref:  (1, 1,  W, Ct)   image row just below the tile (clamped at the border)
    # w_ref:    (9, Ct)          taps in (ky, kx) row-major order, channels last
    # b_ref:    (1, Ct)
    # o_ref:    (1, TH, W, Ct)
    # slab_ref: (TH+2, Wslab, Ct) VMEM scratch: zero-padded input slab assembled here
    TH = o_ref.shape[1]
    W = o_ref.shape[2]
    Ct = o_ref.shape[3]
    Wslab = slab_ref.shape[1]
    dt = slab_ref.dtype

    h = pl.program_id(1)
    last_h = pl.num_programs(1) - 1

    # ---- assemble the zero-padded slab in VMEM (replaces the host-side jnp.pad) ----
    slab_ref[:, 0:1, :] = jnp.zeros((TH + 2, 1, Ct), dt)                    # left pad col
    slab_ref[:, W + 1:, :] = jnp.zeros((TH + 2, Wslab - W - 1, Ct), dt)     # right pad cols
    zrow = jnp.zeros((1, W, Ct), dt)
    slab_ref[0:1, 1:W + 1, :] = jnp.where(h > 0, top_ref[0], zrow)          # top halo row
    slab_ref[TH + 1:TH + 2, 1:W + 1, :] = jnp.where(h < last_h, bot_ref[0], zrow)
    slab_ref[1:TH + 1, 1:W + 1, :] = x_ref[0]                               # center rows

    # ---- 9-tap multiply-accumulate; accumulator register-resident for the strip ----
    w = w_ref[...].astype(jnp.float32)        # (9, Ct), loaded once per grid step
    bias = b_ref[...].astype(jnp.float32)     # (1, Ct)

    acc = jnp.zeros((TH, W, Ct), jnp.float32)
    for ky in range(3):
        for kx in range(3):
            # lazy slice of the slab ref: vertical shift = major-dim offset,
            # horizontal shift = sublane offset; no shifted slab copies are materialized
            xs = slab_ref[ky:ky + TH, kx:kx + W, :].astype(jnp.float32)
            acc = acc + xs * w[3 * ky + kx]

    o_ref[0] = (acc + bias).astype(o_ref.dtype)


def dwconv_forward(x, H, W, weight, bias):
    """DWConv.forward: x (B, N=H*W, C) -> (B, N, C); 3x3 depthwise conv, pad=1, bias."""
    B, N, C = x.shape
    assert N == H * W, "sequence length must equal H * W"

    # H tile: largest divisor of H that is <= 8 (small, sublane-aligned strip acc, and
    # plenty of grid steps so both v7x TensorCores stay busy).
    tile_h = max(d for d in range(1, min(H, 8) + 1) if H % d == 0)
    n_h = H // tile_h

    # channel tile: lane-dense (multiple of 128); shrink it if the grid would otherwise
    # be too small to pipeline / fill both v7x cores.
    cands = [t for t in (512, 256, 128) if C % t == 0]
    if cands:
        c_tile = cands[-1]
        for t in cands:
            if B * n_h * (C // t) >= 8:
                c_tile = t
                break
    else:
        c_tile = C  # correct but masked lanes; prefer C % 128 == 0
    n_c = C // c_tile

    w_slab = _round_up(W + 2, 8)   # scratch slab width (>= 1 zero col each side)

    x_img = x.reshape(B, H, W, C)                          # contiguous -> free reshape
    w9 = jnp.transpose(weight, (1, 2, 0)).reshape(9, C)    # (C,3,3) -> (ky,kx,C) -> (9,C)
    b2 = bias.reshape(1, C)

    out = pl.pallas_call(
        _dwconv_kernel,
        out_shape=jax.ShapeDtypeStruct((B, H, W, C), x.dtype),
        grid=(B, n_h, n_c),
        in_specs=[
            # center rows of this H tile (unpadded)
            pl.BlockSpec((1, tile_h, W, c_tile), lambda b, h, c: (b, h, 0, c)),
            # 1-row halos above / below, clamped at the image border (zeroed in-kernel)
            pl.BlockSpec((1, 1, W, c_tile),
                         lambda b, h, c: (b, jnp.maximum(h * tile_h - 1, 0), 0, c)),
            pl.BlockSpec((1, 1, W, c_tile),
                         lambda b, h, c: (b, jnp.minimum((h + 1) * tile_h, H - 1), 0, c)),
            pl.BlockSpec((9, c_tile), lambda b, h, c: (0, c)),
            pl.BlockSpec((1, c_tile), lambda b, h, c: (0, c)),
        ],
        out_specs=pl.BlockSpec((1, tile_h, W, c_tile), lambda b, h, c: (b, h, 0, c)),
        scratch_shapes=[pltpu.VMEM((tile_h + 2, w_slab, c_tile), x.dtype)],
        compiler_params=pltpu.CompilerParams(
            dimension_semantics=("parallel", "parallel", "parallel")),
    )(x_img, x_img, x_img, w9, b2)

    # (B, H, W, C) -> (B, N, C): contiguous reshape, no extra HBM pass
    return out.reshape(B, N, C)


def _reference_dwconv(x, H, W, weight, bias):
    """Pure-jnp reference with identical semantics (zero-padded 3x3 depthwise conv)."""
    B, N, C = x.shape
    xp = jnp.pad(x.reshape(B, H, W, C), ((0, 0), (1, 1), (1, 1), (0, 0)))
    acc = jnp.zeros((B, H, W, C), jnp.float32)
    for ky in range(3):
        for kx in range(3):
            acc = acc + xp[:, ky:ky + H, kx:kx + W, :].astype(jnp.float32) * weight[:, ky, kx]
    return (acc + bias).astype(x.dtype).reshape(B, N, C)


if __name__ == "__main__":
    key = jax.random.PRNGKey(0)
    k_x, k_w, k_b = jax.random.split(key, 3)

    # dim=128 keeps the channel axis lane-dense (multiple of 128); spatial 16x16, batch 2
    B, H, W, C = 2, 16, 16, 128
    N = H * W

    x = jax.random.normal(k_x, (B, N, C), jnp.float32)
    # Conv2d(groups=dim) weight is (C, 1, 3, 3) in torch -> stored squeezed as (C, 3, 3)
    weight = jax.random.uniform(k_w, (C, 3, 3), jnp.float32, -1.0 / 3.0, 1.0 / 3.0)
    bias = jax.random.uniform(k_b, (C,), jnp.float32, -1.0 / 3.0, 1.0 / 3.0)

    fwd = jax.jit(dwconv_forward, static_argnums=(1, 2))
    out = jax.block_until_ready(fwd(x, H, W, weight, bias))

    ref = _reference_dwconv(x, H, W, weight, bias)

    assert out.shape == (B, N, C)
    assert out.dtype == x.dtype
    assert bool(jnp.all(jnp.isfinite(out)))
    assert bool(jnp.allclose(out, ref, atol=1e-5, rtol=1e-5))
    print("KERNEL_OK")
</pallas_src>

<mosaic_0001>
module attributes {stable_mosaic.version = 11 : i64} {
  func.func @_dwconv_kernel(%arg0: i32, %arg1: i32, %arg2: i32, %arg3: memref<1x8x16x128xf32, #tpu.memory_space<vmem>>, %arg4: memref<1x1x16x128xf32, #tpu.memory_space<vmem>>, %arg5: memref<1x1x16x128xf32, #tpu.memory_space<vmem>>, %arg6: memref<9x128xf32, #tpu.memory_space<vmem>>, %arg7: memref<1x128xf32, #tpu.memory_space<vmem>>, %arg8: memref<1x8x16x128xf32, #tpu.memory_space<vmem>>, %arg9: memref<10x24x128xf32, #tpu.memory_space<vmem>>) attributes {dimension_semantics = [#tpu.dimension_semantics<parallel>, #tpu.dimension_semantics<parallel>, #tpu.dimension_semantics<parallel>], iteration_bounds = array<i64: 2, 2, 1>, scalar_prefetch = 0 : i64, scratch_operands = 1 : i64, tpu.core_type = #tpu.core_type<tc>, window_params = [{transform_indices = @transform_0, window_bounds = array<i64: 1, 8, 16, 128>}, {transform_indices = @transform_1, window_bounds = array<i64: 1, 1, 16, 128>}, {transform_indices = @transform_2, window_bounds = array<i64: 1, 1, 16, 128>}, {transform_indices = @transform_3, window_bounds = array<i64: 9, 128>}, {transform_indices = @transform_4, window_bounds = array<i64: 1, 128>}, {transform_indices = @transform_5, window_bounds = array<i64: 1, 8, 16, 128>}]} {
    %cst = arith.constant 0.000000e+00 : f32
    %0 = vector.broadcast %cst : f32 to vector<10x1x128xf32>
    %c0 = arith.constant 0 : index
    %c0_0 = arith.constant 0 : index
    %c0_1 = arith.constant 0 : index
    %1 = vector.load %arg9[%c0, %c0_0, %c0_1] : memref<10x24x128xf32, #tpu.memory_space<vmem>>, vector<10x1x128xf32>
    tpu.vector_store %arg9[%c0, %c0_0, %c0_1], %0 {strides = array<i32>} : memref<10x24x128xf32, #tpu.memory_space<vmem>>, vector<10x1x128xf32>,
    %cst_2 = arith.constant 0.000000e+00 : f32
    %2 = vector.broadcast %cst_2 : f32 to vector<10x7x128xf32>
    %c0_3 = arith.constant 0 : index
    %c17 = arith.constant 17 : index
    %c0_4 = arith.constant 0 : index
    %3 = vector.load %arg9[%c0_3, %c17, %c0_4] : memref<10x24x128xf32, #tpu.memory_space<vmem>>, vector<10x7x128xf32>
    tpu.vector_store %arg9[%c0_3, %c17, %c0_4], %2 {strides = array<i32>} : memref<10x24x128xf32, #tpu.memory_space<vmem>>, vector<10x7x128xf32>,
    %cst_5 = arith.constant 0.000000e+00 : f32
    %4 = vector.broadcast %cst_5 : f32 to vector<1x16x128xf32>
    %c0_i32 = arith.constant 0 : i32
    %5 = arith.cmpi sgt, %arg1, %c0_i32 : i32
    %c0_6 = arith.constant 0 : index
    %c0_7 = arith.constant 0 : index
    %c0_8 = arith.constant 0 : index
    %c0_9 = arith.constant 0 : index
    %6 = vector.load %arg4[%c0_6, %c0_7, %c0_8, %c0_9] : memref<1x1x16x128xf32, #tpu.memory_space<vmem>>, vector<1x1x16x128xf32>
    %7 = vector.shape_cast %6 : vector<1x1x16x128xf32> to vector<1x16x128xf32>
    %8 = arith.select %5, %7, %4 : vector<1x16x128xf32>
    %c0_10 = arith.constant 0 : index
    %c1 = arith.constant 1 : index
    %c0_11 = arith.constant 0 : index
    %9 = vector.load %arg9[%c0_10, %c1, %c0_11] : memref<10x24x128xf32, #tpu.memory_space<vmem>>, vector<1x16x128xf32>
    tpu.vector_store %arg9[%c0_10, %c1, %c0_11], %8 {strides = array<i32>} : memref<10x24x128xf32, #tpu.memory_space<vmem>>, vector<1x16x128xf32>,
    %c1_i32 = arith.constant 1 : i32
    %10 = arith.cmpi slt, %arg1, %c1_i32 : i32
    %c0_12 = arith.constant 0 : index
    %c0_13 = arith.constant 0 : index
    %c0_14 = arith.constant 0 : index
    %c0_15 = arith.constant 0 : index
    %11 = vector.load %arg5[%c0_12, %c0_13, %c0_14, %c0_15] : memref<1x1x16x128xf32, #tpu.memory_space<vmem>>, vector<1x1x16x128xf32>
    %12 = vector.shape_cast %11 : vector<1x1x16x128xf32> to vector<1x16x128xf32>
    %13 = arith.select %10, %12, %4 : vector<1x16x128xf32>
    %c9 = arith.constant 9 : index
    %c1_16 = arith.constant 1 : index
    %c0_17 = arith.constant 0 : index
    %14 = vector.load %arg9[%c9, %c1_16, %c0_17] : memref<10x24x128xf32, #tpu.memory_space<vmem>>, vector<1x16x128xf32>
    tpu.vector_store %arg9[%c9, %c1_16, %c0_17], %13 {strides = array<i32>} : memref<10x24x128xf32, #tpu.memory_space<vmem>>, vector<1x16x128xf32>,
    %c0_18 = arith.constant 0 : index
    %c0_19 = arith.constant 0 : index
    %c0_20 = arith.constant 0 : index
    %c0_21 = arith.constant 0 : index
    %15 = vector.load %arg3[%c0_18, %c0_19, %c0_20, %c0_21] : memref<1x8x16x128xf32, #tpu.memory_space<vmem>>, vector<1x8x16x128xf32>
    %16 = vector.shape_cast %15 : vector<1x8x16x128xf32> to vector<8x16x128xf32>
    %c1_22 = arith.constant 1 : index
    %c1_23 = arith.constant 1 : index
    %c0_24 = arith.constant 0 : index
    %17 = vector.load %arg9[%c1_22, %c1_23, %c0_24] : memref<10x24x128xf32, #tpu.memory_space<vmem>>, vector<8x16x128xf32>
    tpu.vector_store %arg9[%c1_22, %c1_23, %c0_24], %16 {strides = array<i32>} : memref<10x24x128xf32, #tpu.memory_space<vmem>>, vector<8x16x128xf32>,
    %c0_25 = arith.constant 0 : index
    %c0_26 = arith.constant 0 : index
    %18 = vector.load %arg6[%c0_25, %c0_26] : memref<9x128xf32, #tpu.memory_space<vmem>>, vector<9x128xf32>
    %c0_27 = arith.constant 0 : index
    %c0_28 = arith.constant 0 : index
    %19 = vector.load %arg7[%c0_27, %c0_28] : memref<1x128xf32, #tpu.memory_space<vmem>>, vector<1x128xf32>
    %cst_29 = arith.constant 0.000000e+00 : f32
    %20 = vector.broadcast %cst_29 : f32 to vector<8x16x128xf32>
    %c0_30 = arith.constant 0 : index
    %c0_31 = arith.constant 0 : index
    %c0_32 = arith.constant 0 : index
    %21 = vector.load %arg9[%c0_30, %c0_31, %c0_32] : memref<10x24x128xf32, #tpu.memory_space<vmem>>, vector<8x16x128xf32>
    %22 = vector.extract_strided_slice %18 {offsets = [0, 0], sizes = [1, 128], strides = [1, 1]} : vector<9x128xf32> to vector<1x128xf32>
    %23 = vector.shape_cast %22 : vector<1x128xf32> to vector<128xf32>
    %24 = vector.shape_cast %23 : vector<128xf32> to vector<1x1x128xf32>
    %25 = vector.broadcast %24 : vector<1x1x128xf32> to vector<8x16x128xf32>
    %26 = arith.mulf %21, %25 : vector<8x16x128xf32>
    %27 = arith.addf %20, %26 : vector<8x16x128xf32>
    %c0_33 = arith.constant 0 : index
    %c1_34 = arith.constant 1 : index
    %c0_35 = arith.constant 0 : index
    %28 = vector.load %arg9[%c0_33, %c1_34, %c0_35] : memref<10x24x128xf32, #tpu.memory_space<vmem>>, vector<8x16x128xf32>
    %29 = vector.extract_strided_slice %18 {offsets = [1, 0], sizes = [1, 128], strides = [1, 1]} : vector<9x128xf32> to vector<1x128xf32>
    %30 = vector.shape_cast %29 : vector<1x128xf32> to vector<128xf32>
    %31 = vector.shape_cast %30 : vector<128xf32> to vector<1x1x128xf32>
    %32 = vector.broadcast %31 : vector<1x1x128xf32> to vector<8x16x128xf32>
    %33 = arith.mulf %28, %32 : vector<8x16x128xf32>
    %34 = arith.addf %27, %33 : vector<8x16x128xf32>
    %c0_36 = arith.constant 0 : index
    %c2 = arith.constant 2 : index
    %c0_37 = arith.constant 0 : index
    %35 = vector.load %arg9[%c0_36, %c2, %c0_37] : memref<10x24x128xf32, #tpu.memory_space<vmem>>, vector<8x16x128xf32>
    %36 = vector.extract_strided_slice %18 {offsets = [2, 0], sizes = [1, 128], strides = [1, 1]} : vector<9x128xf32> to vector<1x128xf32>
    %37 = vector.shape_cast %36 : vector<1x128xf32> to vector<128xf32>
    %38 = vector.shape_cast %37 : vector<128xf32> to vector<1x1x128xf32>
    %39 = vector.broadcast %38 : vector<1x1x128xf32> to vector<8x16x128xf32>
    %40 = arith.mulf %35, %39 : vector<8x16x128xf32>
    %41 = arith.addf %34, %40 : vector<8x16x128xf32>
    %c1_38 = arith.constant 1 : index
    %c0_39 = arith.constant 0 : index
    %c0_40 = arith.constant 0 : index
    %42 = vector.load %arg9[%c1_38, %c0_39, %c0_40] : memref<10x24x128xf32, #tpu.memory_space<vmem>>, vector<8x16x128xf32>
    %43 = vector.extract_strided_slice %18 {offsets = [3, 0], sizes = [1, 128], strides = [1, 1]} : vector<9x128xf32> to vector<1x128xf32>
    %44 = vector.shape_cast %43 : vector<1x128xf32> to vector<128xf32>
    %45 = vector.shape_cast %44 : vector<128xf32> to vector<1x1x128xf32>
    %46 = vector.broadcast %45 : vector<1x1x128xf32> to vector<8x16x128xf32>
    %47 = arith.mulf %42, %46 : vector<8x16x128xf32>
    %48 = arith.addf %41, %47 : vector<8x16x128xf32>
    %c1_41 = arith.constant 1 : index
    %c1_42 = arith.constant 1 : index
    %c0_43 = arith.constant 0 : index
    %49 = vector.load %arg9[%c1_41, %c1_42, %c0_43] : memref<10x24x128xf32, #tpu.memory_space<vmem>>, vector<8x16x128xf32>
    %50 = vector.extract_strided_slice %18 {offsets = [4, 0], sizes = [1, 128], strides = [1, 1]} : vector<9x128xf32> to vector<1x128xf32>
    %51 = vector.shape_cast %50 : vector<1x128xf32> to vector<128xf32>
    %52 = vector.shape_cast %51 : vector<128xf32> to vector<1x1x128xf32>
    %53 = vector.broadcast %52 : vector<1x1x128xf32> to vector<8x16x128xf32>
    %54 = arith.mulf %49, %53 : vector<8x16x128xf32>
    %55 = arith.addf %48, %54 : vector<8x16x128xf32>
    %c1_44 = arith.constant 1 : index
    %c2_45 = arith.constant 2 : index
    %c0_46 = arith.constant 0 : index
    %56 = vector.load %arg9[%c1_44, %c2_45, %c0_46] : memref<10x24x128xf32, #tpu.memory_space<vmem>>, vector<8x16x128xf32>
    %57 = vector.extract_strided_slice %18 {offsets = [5, 0], sizes = [1, 128], strides = [1, 1]} : vector<9x128xf32> to vector<1x128xf32>
    %58 = vector.shape_cast %57 : vector<1x128xf32> to vector<128xf32>
    %59 = vector.shape_cast %58 : vector<128xf32> to vector<1x1x128xf32>
    %60 = vector.broadcast %59 : vector<1x1x128xf32> to vector<8x16x128xf32>
    %61 = arith.mulf %56, %60 : vector<8x16x128xf32>
    %62 = arith.addf %55, %61 : vector<8x16x128xf32>
    %c2_47 = arith.constant 2 : index
    %c0_48 = arith.constant 0 : index
    %c0_49 = arith.constant 0 : index
    %63 = vector.load %arg9[%c2_47, %c0_48, %c0_49] : memref<10x24x128xf32, #tpu.memory_space<vmem>>, vector<8x16x128xf32>
    %64 = vector.extract_strided_slice %18 {offsets = [6, 0], sizes = [1, 128], strides = [1, 1]} : vector<9x128xf32> to vector<1x128xf32>
    %65 = vector.shape_cast %64 : vector<1x128xf32> to vector<128xf32>
    %66 = vector.shape_cast %65 : vector<128xf32> to vector<1x1x128xf32>
    %67 = vector.broadcast %66 : vector<1x1x128xf32> to vector<8x16x128xf32>
    %68 = arith.mulf %63, %67 : vector<8x16x128xf32>
    %69 = arith.addf %62, %68 : vector<8x16x128xf32>
    %c2_50 = arith.constant 2 : index
    %c1_51 = arith.constant 1 : index
    %c0_52 = arith.constant 0 : index
    %70 = vector.load %arg9[%c2_50, %c1_51, %c0_52] : memref<10x24x128xf32, #tpu.memory_space<vmem>>, vector<8x16x128xf32>
    %71 = vector.extract_strided_slice %18 {offsets = [7, 0], sizes = [1, 128], strides = [1, 1]} : vector<9x128xf32> to vector<1x128xf32>
    %72 = vector.shape_cast %71 : vector<1x128xf32> to vector<128xf32>
    %73 = vector.shape_cast %72 : vector<128xf32> to vector<1x1x128xf32>
    %74 = vector.broadcast %73 : vector<1x1x128xf32> to vector<8x16x128xf32>
    %75 = arith.mulf %70, %74 : vector<8x16x128xf32>
    %76 = arith.addf %69, %75 : vector<8x16x128xf32>
    %c2_53 = arith.constant 2 : index
    %c2_54 = arith.constant 2 : index
    %c0_55 = arith.constant 0 : index
    %77 = vector.load %arg9[%c2_53, %c2_54, %c0_55] : memref<10x24x128xf32, #tpu.memory_space<vmem>>, vector<8x16x128xf32>
    %78 = vector.extract_strided_slice %18 {offsets = [8, 0], sizes = [1, 128], strides = [1, 1]} : vector<9x128xf32> to vector<1x128xf32>
    %79 = vector.shape_cast %78 : vector<1x128xf32> to vector<128xf32>
    %80 = vector.shape_cast %79 : vector<128xf32> to vector<1x1x128xf32>
    %81 = vector.broadcast %80 : vector<1x1x128xf32> to vector<8x16x128xf32>
    %82 = arith.mulf %77, %81 : vector<8x16x128xf32>
    %83 = arith.addf %76, %82 : vector<8x16x128xf32>
    %84 = vector.shape_cast %19 : vector<1x128xf32> to vector<1x1x128xf32>
    %85 = vector.broadcast %84 : vector<1x1x128xf32> to vector<8x16x128xf32>
    %86 = arith.addf %83, %85 : vector<8x16x128xf32>
    %c0_56 = arith.constant 0 : index
    %c0_57 = arith.constant 0 : index
    %c0_58 = arith.constant 0 : index
    %c0_59 = arith.constant 0 : index
    %87 = vector.load %arg8[%c0_56, %c0_57, %c0_58, %c0_59] : memref<1x8x16x128xf32, #tpu.memory_space<vmem>>, vector<1x8x16x128xf32>
    %88 = vector.shape_cast %87 : vector<1x8x16x128xf32> to vector<8x16x128xf32>
    %89 = vector.shape_cast %86 : vector<8x16x128xf32> to vector<1x8x16x128xf32>
    tpu.vector_store %arg8[%c0_56, %c0_57, %c0_58, %c0_59], %89 {strides = array<i32>} : memref<1x8x16x128xf32, #tpu.memory_space<vmem>>, vector<1x8x16x128xf32>,
    return
  }
  func.func @transform_0(%arg0: i32, %arg1: i32, %arg2: i32) -> (i32, i32, i32, i32) {
    %c0_i32 = arith.constant 0 : i32
    %c0_i32_0 = arith.constant 0 : i32
    return %arg0, %arg1, %c0_i32, %arg2 : i32, i32, i32, i32
  }
  func.func @transform_1(%arg0: i32, %arg1: i32, %arg2: i32) -> (i32, i32, i32, i32) {
    %c8_i32 = arith.constant 8 : i32
    %0 = arith.muli %arg1, %c8_i32 : i32
    %c1_i32 = arith.constant 1 : i32
    %1 = arith.subi %0, %c1_i32 : i32
    %c0_i32 = arith.constant 0 : i32
    %2 = arith.maxsi %1, %c0_i32 : i32
    %c0_i32_0 = arith.constant 0 : i32
    %c0_i32_1 = arith.constant 0 : i32
    return %arg0, %2, %c0_i32_0, %arg2 : i32, i32, i32, i32
  }
  func.func @transform_2(%arg0: i32, %arg1: i32, %arg2: i32) -> (i32, i32, i32, i32) {
    %c1_i32 = arith.constant 1 : i32
    %0 = arith.addi %arg1, %c1_i32 : i32
    %c8_i32 = arith.constant 8 : i32
    %1 = arith.muli %0, %c8_i32 : i32
    %c15_i32 = arith.constant 15 : i32
    %2 = arith.minsi %1, %c15_i32 : i32
    %c0_i32 = arith.constant 0 : i32
    %c0_i32_0 = arith.constant 0 : i32
    return %arg0, %2, %c0_i32, %arg2 : i32, i32, i32, i32
  }
  func.func @transform_3(%arg0: i32, %arg1: i32, %arg2: i32) -> (i32, i32) {
    %c0_i32 = arith.constant 0 : i32
    %c0_i32_0 = arith.constant 0 : i32
    return %c0_i32, %arg2 : i32, i32
  }
  func.func @transform_4(%arg0: i32, %arg1: i32, %arg2: i32) -> (i32, i32) {
    %c0_i32 = arith.constant 0 : i32
    %c0_i32_0 = arith.constant 0 : i32
    return %c0_i32, %arg2 : i32, i32
  }
  func.func @transform_5(%arg0: i32, %arg1: i32, %arg2: i32) -> (i32, i32, i32, i32) {
    %c0_i32 = arith.constant 0 : i32
    %c0_i32_0 = arith.constant 0 : i32
    return %arg0, %arg1, %c0_i32, %arg2 : i32, i32, i32, i32
  }
}

</mosaic_0001>

<llo_original>
// kernel: dwconv_forward.1
$region0: #{dwconv_forward.1}
  #allocation0 [shape = 'u32[]', space=smem, size = 0x4, offset = 0x4, fixed_abs, tag = 'smem constant byte address 0x4 - core index']
  #allocation1 [shape = 'u32[144,128]{1,0:T(1,128)}', space=vmem, size = 0x12000, scoped, tag = 'internal scratch']
  #allocation2 [shape = 'f32[10,24,128]{2,1,0:T(8,128)}', space=vmem, size = 0x1e000, scoped, tag = 'scratch operand']
  %s0 = inlined_call_operand.hbm [shape: f32[2,16,16,128], index: 0, kind: input, shape index: {}, may-alias: {0,1,2}]
  %s1 = inlined_call_operand.hbm [shape: f32[2,16,16,128], index: 1, kind: input, shape index: {}, may-alias: {0,1,2}]
  %s2 = inlined_call_operand.hbm [shape: f32[2,16,16,128], index: 2, kind: input, shape index: {}, may-alias: {0,1,2}]
  %s3 = inlined_call_operand.vmem [shape: f32[9,128], index: 3, kind: input, shape index: {}]
  %s4 = inlined_call_operand.vmem [shape: f32[1,128], index: 4, kind: input, shape index: {}]
  %s5 = inlined_call_operand.hbm [shape: f32[2,16,16,128], index: 5, kind: output, shape index: {}]
  %s6 = sld [smem:[#allocation0]]
  $region65: #{dwconv_forward.1} parent=0
    _
  %s8 = ssub.s32 1, %s6
  %s9 = scalar_select 0, %s8, %s6
  $region1: #{dwconv_forward.1} parent=0
    #allocation3 [shape = 'u8[131072]{0}', space=vmem, size = 0x20000, scoped, tag = 'input window, operand 0']
    #allocation4 [shape = 's32[2]{0}', space=sflag, size = 0x8, scoped, tag = 'scoped memory for dwconv_forward.1']
    #allocation5 [shape = 's32[2]{0}', space=sflag, size = 0x8, scoped, tag = 'scoped memory for dwconv_forward.1']
    #allocation6 [shape = 'u8[16384]{0}', space=vmem, size = 0x4000, scoped, tag = 'input window, operand 1']
    #allocation7 [shape = 's32[2]{0}', space=sflag, size = 0x8, scoped, tag = 'scoped memory for dwconv_forward.1']
    #allocation8 [shape = 'u8[16384]{0}', space=vmem, size = 0x4000, scoped, tag = 'input window, operand 2']
    #allocation9 [shape = 'u8[131072]{0}', space=vmem, size = 0x20000, scoped, tag = 'output window, operand 0']
    %10 = vsyncpa [#allocation4], 0
    %s11 = scalar_lea.sflag [#allocation4], 1
    %12 = vsyncpa %s11, 0
    %13 = vsyncpa [#allocation7], 0
    %s14 = scalar_lea.sflag [#allocation7], 1
    %15 = vsyncpa %s14, 0
    %16 = vsyncpa [#allocation5], 0
    %s17 = scalar_lea.sflag [#allocation5], 1
    %18 = vsyncpa %s17, 0
    loop: start=0, step=1, limit=6
    $region2: #{dwconv_forward.1} parent=1 // loop_pre_header
      _
    $region3: #{dwconv_forward.1} parent=1 // loop_header
      %s20 = sphi 0, %s24
      %p21 = scmp.ge.s32.totalorder %s20, 6
      %s27 = sphi 0, %s46
      %s28 = sphi 0, %s42
      %s29 = sphi 0, %s38
      %s30 = sphi 0, %s27
      %s31 = sphi 0, %s28
      %s32 = sphi 0, %s29
      %s33 = sphi 0, %s30
      %s34 = sphi 0, %s31
      %s35 = sphi 0, %s32
      %s53 = sphi 0, %s55
      %s56 = sphi 0, %s53
      %s57 = sphi 0, %s56
      %s73 = sphi 0, %s57
      %s91 = sphi 0, %s93
      %s94 = sphi 0, %s91
      %s95 = sphi 0, %s94
      %s111 = sphi 0, %s95
      %s129 = sphi 0, %s131
      %s132 = sphi 0, %s129
      %s133 = sphi 0, %s132
      %s149 = sphi 0, %s133
      %s155 = sphi 0, %s157
      %s158 = sphi 0, %s155
      %s159 = sphi 0, %s158
      %s175 = sphi 0, %s159
      %s181 = sphi 0, %s183
      %s184 = sphi 0, %s181
      %s185 = sphi 0, %s184
      %s201 = sphi 0, %s185
      %s211 = sphi 0, %s213
      %s214 = sphi 0, %s211
      %s215 = sphi 0, %s214
      %s231 = sphi 0, %s215
    $region4: #{dwconv_forward.1} parent=1 // loop_header_branch
      %23 = sbr.rel (%p21) target = $region8
    $region5: #{dwconv_forward.1} parent=1 // loop_body
      %s25 = ssub.s32 %s20, 1
      %s26 = ssub.s32 %s20, 2
      %s36 = sadd.s32 1, %s29
      %p37 = scmp.ge.s32.totalorder %s36, 1
      %s38 = scalar_select %p37, 0, %s36
      %s39 = sadd.s32 1, %s28
      %s40 = scalar_select %p37, %s39, %s28
      %p41 = scmp.ge.s32.totalorder %s40, 2
      %s42 = scalar_select %p41, 0, %s40
      %s43 = sadd.s32 1, %s27
      %s44 = scalar_select %p41, %s43, %s27
      %p45 = scmp.ge.s32.totalorder %s44, 2
      %s46 = scalar_select %p45, 0, %s44
      %s47 = ssub.s32 %s27, %s46
      %s48 = ssub.s32 %s28, %s42
      %s49 = sor.u32 %s47, %s48
      %s50 = ssub.s32 %s29, %s38
      %s51 = sor.u32 %s49, %s50
      %p52 = scmp.eq.s32.totalorder %s51, 0
      %s54 = sadd.s32 %s53, 1
      %s55 = scalar_select %p52, %s53, %s54
      %p58 = pneg %p52
      %p59 = scmp.eq.s32.totalorder %s20, 3
      %p60 = por %p58, %p59
      %p61 = scmp.ne.s32.totalorder %s53, %s56
      %p62 = scmp.eq.s32.totalorder %s20, 0
      %p63 = por %p61, %p62
      %p64 = scmp.ne.s32.totalorder %s53, %s56
      %p65 = scmp.eq.s32.totalorder %s25, 3
      %p66 = por %p64, %p65
      %p67 = scmp.ne.s32.totalorder %s56, %s57
      %p68 = scmp.eq.s32.totalorder %s25, 0
      %p69 = por %p67, %p68
      %p70 = scmp.ne.s32.totalorder %s56, %s57
      %p71 = scmp.eq.s32.totalorder %s26, 3
      %p72 = por %p70, %p71
      %p74 = scmp.ne.s32.totalorder %s57, %s73
      %p75 = scmp.eq.s32.totalorder %s26, 0
      %p76 = por %p74, %p75
      %s77 = smul.u32 %s28, 8
      %s78 = ssub.s32 %s77, 1
      %p79 = scmp.gt.s32.totalorder %s78, 0
      %s80 = scalar_select %p79, %s78, 0
      %s81 = smul.u32 %s42, 8
      %s82 = ssub.s32 %s81, 1
      %p83 = scmp.gt.s32.totalorder %s82, 0
      %s84 = scalar_select %p83, %s82, 0
      %s85 = ssub.s32 %s27, %s46
      %s86 = ssub.s32 %s80, %s84
      %s87 = sor.u32 %s85, %s86
      %s88 = ssub.s32 %s29, %s38
      %s89 = sor.u32 %s87, %s88
      %p90 = scmp.eq.s32.totalorder %s89, 0
      %s92 = sadd.s32 %s91, 1
      %s93 = scalar_select %p90, %s91, %s92
      %p96 = pneg %p90
      %p97 = scmp.eq.s32.totalorder %s20, 3
      %p98 = por %p96, %p97
      %p99 = scmp.ne.s32.totalorder %s91, %s94
      %p100 = scmp.eq.s32.totalorder %s20, 0
      %p101 = por %p99, %p100
      %p102 = scmp.ne.s32.totalorder %s91, %s94
      %p103 = scmp.eq.s32.totalorder %s25, 3
      %p104 = por %p102, %p103
      %p105 = scmp.ne.s32.totalorder %s94, %s95
      %p106 = scmp.eq.s32.totalorder %s25, 0
      %p107 = por %p105, %p106
      %p108 = scmp.ne.s32.totalorder %s94, %s95
      %p109 = scmp.eq.s32.totalorder %s26, 3
      %p110 = por %p108, %p109
      %p112 = scmp.ne.s32.totalorder %s95, %s111
      %p113 = scmp.eq.s32.totalorder %s26, 0
      %p114 = por %p112, %p113
      %s115 = sadd.s32 %s28, 1
      %s116 = smul.u32 %s115, 8
      %p117 = scmp.lt.s32.totalorder %s116, 15
      %s118 = scalar_select %p117, %s116, 15
      %s119 = sadd.s32 %s42, 1
      %s120 = smul.u32 %s119, 8
      %p121 = scmp.lt.s32.totalorder %s120, 15
      %s122 = scalar_select %p121, %s120, 15
      %s123 = ssub.s32 %s27, %s46
      %s124 = ssub.s32 %s118, %s122
      %s125 = sor.u32 %s123, %s124
      %s126 = ssub.s32 %s29, %s38
      %s127 = sor.u32 %s125, %s126
      %p128 = scmp.eq.s32.totalorder %s127, 0
      %s130 = sadd.s32 %s129, 1
      %s131 = scalar_select %p128, %s129, %s130
      %p134 = pneg %p128
      %p135 = scmp.eq.s32.totalorder %s20, 3
      %p136 = por %p134, %p135
      %p137 = scmp.ne.s32.totalorder %s129, %s132
      %p138 = scmp.eq.s32.totalorder %s20, 0
      %p139 = por %p137, %p138
      %p140 = scmp.ne.s32.totalorder %s129, %s132
      %p141 = scmp.eq.s32.totalorder %s25, 3
      %p142 = por %p140, %p141
      %p143 = scmp.ne.s32.totalorder %s132, %s133
      %p144 = scmp.eq.s32.totalorder %s25, 0
      %p145 = por %p143, %p144
      %p146 = scmp.ne.s32.totalorder %s132, %s133
      %p147 = scmp.eq.s32.totalorder %s26, 3
      %p148 = por %p146, %p147
      %p150 = scmp.ne.s32.totalorder %s133, %s149
      %p151 = scmp.eq.s32.totalorder %s26, 0
      %p152 = por %p150, %p151
      %s153 = ssub.s32 %s29, %s38
      %p154 = scmp.eq.s32.totalorder %s153, 0
      %s156 = sadd.s32 %s155, 1
      %s157 = scalar_select %p154, %s155, %s156
      %p160 = pneg %p154
      %p161 = scmp.eq.s32.totalorder %s20, 3
      %p162 = por %p160, %p161
      %p163 = scmp.ne.s32.totalorder %s155, %s158
      %p164 = scmp.eq.s32.totalorder %s20, 0
      %p165 = por %p163, %p164
      %p166 = scmp.ne.s32.totalorder %s155, %s158
      %p167 = scmp.eq.s32.totalorder %s25, 3
      %p168 = por %p166, %p167
      %p169 = scmp.ne.s32.totalorder %s158, %s159
      %p170 = scmp.eq.s32.totalorder %s25, 0
      %p171 = por %p169, %p170
      %p172 = scmp.ne.s32.totalorder %s158, %s159
      %p173 = scmp.eq.s32.totalorder %s26, 3
      %p174 = por %p172, %p173
      %p176 = scmp.ne.s32.totalorder %s159, %s175
      %p177 = scmp.eq.s32.totalorder %s26, 0
      %p178 = por %p176, %p177
      %s179 = ssub.s32 %s29, %s38
      %p180 = scmp.eq.s32.totalorder %s179, 0
      %s182 = sadd.s32 %s181, 1
      %s183 = scalar_select %p180, %s181, %s182
      %p186 = pneg %p180
      %p187 = scmp.eq.s32.totalorder %s20, 3
      %p188 = por %p186, %p187
      %p189 = scmp.ne.s32.totalorder %s181, %s184
      %p190 = scmp.eq.s32.totalorder %s20, 0
      %p191 = por %p189, %p190
      %p192 = scmp.ne.s32.totalorder %s181, %s184
      %p193 = scmp.eq.s32.totalorder %s25, 3
      %p194 = por %p192, %p193
      %p195 = scmp.ne.s32.totalorder %s184, %s185
      %p196 = scmp.eq.s32.totalorder %s25, 0
      %p197 = por %p195, %p196
      %p198 = scmp.ne.s32.totalorder %s184, %s185
      %p199 = scmp.eq.s32.totalorder %s26, 3
      %p200 = por %p198, %p199
      %p202 = scmp.ne.s32.totalorder %s185, %s201
      %p203 = scmp.eq.s32.totalorder %s26, 0
      %p204 = por %p202, %p203
      %s205 = ssub.s32 %s27, %s46
      %s206 = ssub.s32 %s28, %s42
      %s207 = sor.u32 %s205, %s206
      %s208 = ssub.s32 %s29, %s38
      %s209 = sor.u32 %s207, %s208
      %p210 = scmp.eq.s32.totalorder %s209, 0
      %s212 = sadd.s32 %s211, 1
      %s213 = scalar_select %p210, %s211, %s212
      %p216 = pneg %p210
      %p217 = scmp.eq.s32.totalorder %s20, 3
      %p218 = por %p216, %p217
      %p219 = scmp.ne.s32.totalorder %s211, %s214
      %p220 = scmp.eq.s32.totalorder %s20, 0
      %p221 = por %p219, %p220
      %p222 = scmp.ne.s32.totalorder %s211, %s214
      %p223 = scmp.eq.s32.totalorder %s25, 3
      %p224 = por %p222, %p223
      %p225 = scmp.ne.s32.totalorder %s214, %s215
      %p226 = scmp.eq.s32.totalorder %s25, 0
      %p227 = por %p225, %p226
      %p228 = scmp.ne.s32.totalorder %s214, %s215
      %p229 = scmp.eq.s32.totalorder %s26, 3
      %p230 = por %p228, %p229
      %p232 = scmp.ne.s32.totalorder %s215, %s231
      %p233 = scmp.eq.s32.totalorder %s26, 0
      %p234 = por %p232, %p233
      %p235 = scmp.le.s32.totalorder 1, %s20
      %p236 = scmp.lt.s32.totalorder %s20, 5
      %p237 = pnand %p235, %p236
      %p238 = pneg %p237
      // Predicated region
      $region9: #{dwconv_forward.1} parent=5 // pred_check
        _
      $region10: #{dwconv_forward.1} parent=5 // pred_check_branch
        %240 = sbr.rel (%p237) target = $region12
      $region11: #{dwconv_forward.1} parent=5 // pred_region
        %s241 = ssub.s32 %s20, 1
        // Predicated region
        $region13: #{dwconv_forward.1} parent=11 // pred_check
          %p242 = pneg %p171
        $region14: #{dwconv_forward.1} parent=11 // pred_check_branch
          %244 = sbr.rel (%p242) target = $region16
        $region15: #{dwconv_forward.1} parent=11 // pred_region
          %p245 = scmp.lt.s32.totalorder %s32, 0
          %s246 = scalar_select %p245, %s32, 0
          %s247 = smul.addr %s246, 8
          %s248 = scalar_lea.vmem %s3, %s247
        $region16: #{dwconv_forward.1} parent=11 // pred_fallthru
          _
        // Predicated region
        $region17: #{dwconv_forward.1} parent=11 // pred_check
          %p249 = pneg %p197
        $region18: #{dwconv_forward.1} parent=11 // pred_check_branch
          %251 = sbr.rel (%p249) target = $region20
        $region19: #{dwconv_forward.1} parent=11 // pred_region
          %p252 = scmp.lt.s32.totalorder %s32, 0
          %s253 = scalar_select %p252, %s32, 0
          %s254 = scalar_lea.vmem %s4, %s253
        $region20: #{dwconv_forward.1} parent=11 // pred_fallthru
          _
      $region12: #{dwconv_forward.1} parent=5 // pred_fallthru
        _
      %p255 = scmp.lt.s32.totalorder %s20, 4
      // Predicated region
      $region21: #{dwconv_forward.1} parent=5 // pred_check
        %p256 = pneg %p255
      $region22: #{dwconv_forward.1} parent=5 // pred_check_branch
        %258 = sbr.rel (%p256) target = $region24
      $region23: #{dwconv_forward.1} parent=5 // pred_region
        // Predicated region
        $region25: #{dwconv_forward.1} parent=23 // pred_check
          %p259 = pneg %p63
        $region26: #{dwconv_forward.1} parent=23 // pred_check_branch
          %261 = sbr.rel (%p259) target = $region28
        $region27: #{dwconv_forward.1} parent=23 // pred_region
          %s262 = sand.u32 %s53, 1
          %s263 = scalar_lea.sflag [#allocation4], %s262
          %s264 = sand.u32 %s53, 1
          %s265 = smul.addr %s264, 128
          %s266 = scalar_lea.vmem [#allocation3], %s265
          %s267 = smul.u32 8, %s28
          %s269 = ssub.s32 2048, 2048
          %270 = vsyncadd %s263, %s269
          %s271 = smul.addr %s267, 2
          %s272 = sadd.s32 %s29, %s271
          %s273 = smul.addr %s27, 32
          %s274 = sadd.s32 %s272, %s273
          %s275 = smul.addr %s274, 128
          %s276 = scalar_lea.hbm %s0, %s275
          %s277 = sshll.u32 %s266, 4
          %s278 = int_to_ptr.vmem [resolvable:$true] %s277
          %283 = dma.hbm_to_vmem [thread:$0]  %s276, 2048, %s278, %s263, 128, 128, 8
        $region28: #{dwconv_forward.1} parent=23 // pred_fallthru
          _
        // Predicated region
        $region29: #{dwconv_forward.1} parent=23 // pred_check
          %p284 = pneg %p101
        $region30: #{dwconv_forward.1} parent=23 // pred_check_branch
          %286 = sbr.rel (%p284) target = $region32
        $region31: #{dwconv_forward.1} parent=23 // pred_region
          %s287 = sand.u32 %s20, 1
          %s288 = scalar_lea.sflag [#allocation7], %s287
          %s289 = sand.u32 %s91, 1
          %s290 = smul.addr %s289, 16
          %s291 = scalar_lea.vmem [#allocation6], %s290
          %s292 = smul.u32 %s28, 8
          %s293 = ssub.s32 %s292, 1
          %p294 = scmp.gt.s32.totalorder %s293, 0
          %s295 = scalar_select %p294, %s293, 0
          %s297 = ssub.s32 256, 256
          %298 = vsyncadd %s288, %s297
          %s299 = smul.addr %s295, 2
          %s300 = sadd.s32 %s29, %s299
          %s301 = smul.addr %s27, 32
          %s302 = sadd.s32 %s300, %s301
          %s303 = smul.addr %s302, 128
          %s304 = scalar_lea.hbm %s1, %s303
          %s305 = sshll.u32 %s291, 4
          %s306 = int_to_ptr.vmem [resolvable:$true] %s305
          %311 = dma.hbm_to_vmem [thread:$0]  %s304, 256, %s306, %s288, 128, 128, 8
        $region32: #{dwconv_forward.1} parent=23 // pred_fallthru
          _
        // Predicated region
        $region33: #{dwconv_forward.1} parent=23 // pred_check
          %p312 = pneg %p139
        $region34: #{dwconv_forward.1} parent=23 // pred_check_branch
          %314 = sbr.rel (%p312) target = $region36
        $region35: #{dwconv_forward.1} parent=23 // pred_region
          %s315 = sand.u32 %s20, 1
          %s316 = scalar_lea.sflag [#allocation7], %s315
          %s317 = sand.u32 %s129, 1
          %s318 = smul.addr %s317, 16
          %s319 = scalar_lea.vmem [#allocation8], %s318
          %s320 = sadd.s32 %s28, 1
          %s321 = smul.u32 %s320, 8
          %p322 = scmp.lt.s32.totalorder %s321, 15
          %s323 = scalar_select %p322, %s321, 15
          %s325 = ssub.s32 256, 256
          %326 = vsyncadd %s316, %s325
          %s327 = smul.addr %s323, 2
          %s328 = sadd.s32 %s29, %s327
          %s329 = smul.addr %s27, 32
          %s330 = sadd.s32 %s328, %s329
          %s331 = smul.addr %s330, 128
          %s332 = scalar_lea.hbm %s2, %s331
          %s333 = sshll.u32 %s319, 4
          %s334 = int_to_ptr.vmem [resolvable:$true] %s333
          %339 = dma.hbm_to_vmem [thread:$0]  %s332, 256, %s334, %s316, 128, 128, 8
        $region36: #{dwconv_forward.1} parent=23 // pred_fallthru
          _
      $region24: #{dwconv_forward.1} parent=5 // pred_fallthru
        _
      %p340 = scmp.le.s32.totalorder 1, %s20
      %p341 = scmp.lt.s32.totalorder %s20, 5
      %p342 = pnand %p340, %p341
      %p343 = pneg %p342
      // Predicated region
      $region37: #{dwconv_forward.1} parent=5 // pred_check
        _
      $region38: #{dwconv_forward.1} parent=5 // pred_check_branch
        %345 = sbr.rel (%p342) target = $region40
      $region39: #{dwconv_forward.1} parent=5 // pred_region
        %s346 = ssub.s32 %s20, 1
        %s347 = sand.u32 %s56, 1
        %s348 = scalar_lea.sflag [#allocation4], %s347
        %s349 = sand.u32 %s56, 1
        %s350 = smul.addr %s349, 128
        %s351 = scalar_lea.vmem [#allocation3], %s350
        // Predicated region
        $region41: #{dwconv_forward.1} parent=39 // pred_check
          %p352 = pneg %p69
        $region42: #{dwconv_forward.1} parent=39 // pred_check_branch
          %354 = sbr.rel (%p352) target = $region44
        $region43: #{dwconv_forward.1} parent=39 // pred_region
          %355 = dma.done %s348, 2048
        $region44: #{dwconv_forward.1} parent=39 // pred_fallthru
          _
        %s356 = sand.u32 %s25, 1
        %s357 = scalar_lea.sflag [#allocation7], %s356
        %s358 = sand.u32 %s94, 1
        %s359 = smul.addr %s358, 16
        %s360 = scalar_lea.vmem [#allocation6], %s359
        // Predicated region
        $region45: #{dwconv_forward.1} parent=39 // pred_check
          %p361 = pneg %p107
        $region46: #{dwconv_forward.1} parent=39 // pred_check_branch
          %363 = sbr.rel (%p361) target = $region48
        $region47: #{dwconv_forward.1} parent=39 // pred_region
          %364 = dma.done %s357, 256
        $region48: #{dwconv_forward.1} parent=39 // pred_fallthru
          _
        %s365 = sand.u32 %s25, 1
        %s366 = scalar_lea.sflag [#allocation7], %s365
        %s367 = sand.u32 %s132, 1
        %s368 = smul.addr %s367, 16
        %s369 = scalar_lea.vmem [#allocation8], %s368
        // Predicated region
        $region49: #{dwconv_forward.1} parent=39 // pred_check
          %p370 = pneg %p145
        $region50: #{dwconv_forward.1} parent=39 // pred_check_branch
          %372 = sbr.rel (%p370) target = $region52
        $region51: #{dwconv_forward.1} parent=39 // pred_region
          %373 = dma.done %s366, 256
        $region52: #{dwconv_forward.1} parent=39 // pred_fallthru
          _
        %s374 = sand.u32 %s56, 1
        %s375 = scalar_lea.sflag [#allocation4], %s374
        %s376 = sand.u32 %s56, 1
        %s377 = smul.addr %s376, 128
        %s378 = scalar_lea.vmem [#allocation3], %s377
        %p379 = pneg %p69
        %p380 = pneg %p66
        %s381 = sand.u32 %s25, 1
        %s382 = scalar_lea.sflag [#allocation7], %s381
        %s383 = sand.u32 %s94, 1
        %s384 = smul.addr %s383, 16
        %s385 = scalar_lea.vmem [#allocation6], %s384
        %p386 = pneg %p107
        %p387 = pneg %p104
        %s388 = sand.u32 %s25, 1
        %s389 = scalar_lea.sflag [#allocation7], %s388
        %s390 = sand.u32 %s132, 1
        %s391 = smul.addr %s390, 16
        %s392 = scalar_lea.vmem [#allocation8], %s391
        %p393 = pneg %p145
        %p394 = pneg %p142
        %p395 = scmp.lt.s32.totalorder %s32, 0
        %s396 = scalar_select %p395, %s32, 0
        %s397 = smul.addr %s396, 8
        %s398 = scalar_lea.vmem %s3, %s397
        %p399 = pneg %p171
        %p400 = pneg %p168
        %p401 = scmp.lt.s32.totalorder %s32, 0
        %s402 = scalar_select %p401, %s32, 0
        %s403 = scalar_lea.vmem %s4, %s402
        %p404 = pneg %p197
        %p405 = pneg %p194
        %p406 = pneg %p227
        %p407 = pneg %p224
        %s408 = sand.u32 %s214, 1
        %s409 = scalar_lea.sflag [#allocation5], %s408
        %s410 = sand.u32 %s214, 1
        %s411 = smul.addr %s410, 128
        %s412 = scalar_lea.vmem [#allocation9], %s411
        %s413 = smul.u32 8, %s31
        %s414 = smul.u32 %s31, 8
        %s415 = ssub.s32 %s414, 1
        %p416 = scmp.gt.s32.totalorder %s415, 0
        %s417 = scalar_select %p416, %s415, 0
        %s418 = sadd.s32 %s31, 1
        %s419 = smul.u32 %s418, 8
        %p420 = scmp.lt.s32.totalorder %s419, 15
        %s421 = scalar_select %p420, %s419, 15
        %p422 = scmp.lt.s32.totalorder %s32, 0
        %s423 = scalar_select %p422, %s32, 0
        %s424 = smul.addr %s423, 8
        %s425 = scalar_lea.vmem %s3, %s424
        %p426 = scmp.lt.s32.totalorder %s32, 0
        %s427 = scalar_select %p426, %s32, 0
        %s428 = scalar_lea.vmem %s4, %s427
        %s429 = smul.u32 8, %s31
        %430 = vst [vmem:[#allocation2] sm:$0x1] 0.0
        %431 = vst [vmem:[#allocation2 + $0x18] sm:$0x1] 0.0
        %432 = vst [vmem:[#allocation2 + $0x30] sm:$0x1] 0.0
        %433 = vst [vmem:[#allocation2 + $0x48] sm:$0x1] 0.0
        %434 = vst [vmem:[#allocation2 + $0x60] sm:$0x1] 0.0
        %435 = vst [vmem:[#allocation2 + $0x78] sm:$0x1] 0.0
        %436 = vst [vmem:[#allocation2 + $0x90] sm:$0x1] 0.0
        %437 = vst [vmem:[#allocation2 + $0xa8] sm:$0x1] 0.0
        %438 = vst [vmem:[#allocation2 + $0xc0] sm:$0x1] 0.0
        %439 = vst [vmem:[#allocation2 + $0xd8] sm:$0x1] 0.0
        %440 = vst [vmem:[#allocation2 + $0x11] sm:$0x7f] 0.0
        %441 = vst [vmem:[#allocation2 + $0x29] sm:$0x7f] 0.0
        %442 = vst [vmem:[#allocation2 + $0x41] sm:$0x7f] 0.0
        %443 = vst [vmem:[#allocation2 + $0x59] sm:$0x7f] 0.0
        %444 = vst [vmem:[#allocation2 + $0x71] sm:$0x7f] 0.0
        %445 = vst [vmem:[#allocation2 + $0x89] sm:$0x7f] 0.0
        %446 = vst [vmem:[#allocation2 + $0xa1] sm:$0x7f] 0.0
        %447 = vst [vmem:[#allocation2 + $0xb9] sm:$0x7f] 0.0
        %448 = vst [vmem:[#allocation2 + $0xd1] sm:$0x7f] 0.0
        %449 = vst [vmem:[#allocation2 + $0xe9] sm:$0x7f] 0.0
        %p450 = scmp.gt.s32.totalorder %s31, 0
        %v451 = vld [vmem:[%s360] sm:$0xff]
        %v452 = vld [vmem:[%s360 + $0x8] sm:$0xff]
        %s453 = scalar_select %p450, 1, 0
        %v454 = vstv %s453
        %vm455 = vcmp.eq.s32.totalorder %v454, 1
        %v456 = vsel %vm455, %v451, 0.0
        %v457 = vsel %vm455, %v452, 0.0
        %458 = vst [vmem:[#allocation2 + $0x1] sm:$0xff] %v456
        %459 = vst [vmem:[#allocation2 + $0x9] sm:$0xff] %v457
        %p460 = scmp.lt.s32.totalorder %s31, 1
        %v461 = vld [vmem:[%s369] sm:$0xff]
        %v462 = vld [vmem:[%s369 + $0x8] sm:$0xff]
        %s463 = scalar_select %p460, 1, 0
        %v464 = vstv %s463
        %vm465 = vcmp.eq.s32.totalorder %v464, 1
        %v466 = vsel %vm465, %v461, 0.0
        %v467 = vsel %vm465, %v462, 0.0
        %s468 = scalar_lea.vmem [#allocation2], 216
        %469 = vst [vmem:[%s468 + $0x1] sm:$0xff] %v466
        %470 = vst [vmem:[%s468 + $0x9] sm:$0xff] %v467
        %v471 = vld [vmem:[%s351] sm:$0xff]
        %v472 = vld [vmem:[%s351 + $0x8] sm:$0xff]
        %v473 = vld [vmem:[%s351 + $0x10] sm:$0xff]
        %v474 = vld [vmem:[%s351 + $0x18] sm:$0xff]
        %v475 = vld [vmem:[%s351 + $0x20] sm:$0xff]
        %v476 = vld [vmem:[%s351 + $0x28] sm:$0xff]
        %v477 = vld [vmem:[%s351 + $0x30] sm:$0xff]
        %v478 = vld [vmem:[%s351 + $0x38] sm:$0xff]
        %v479 = vld [vmem:[%s351 + $0x40] sm:$0xff]
        %v480 = vld [vmem:[%s351 + $0x48] sm:$0xff]
        %v481 = vld [vmem:[%s351 + $0x50] sm:$0xff]
        %v482 = vld [vmem:[%s351 + $0x58] sm:$0xff]
        %v483 = vld [vmem:[%s351 + $0x60] sm:$0xff]
        %v484 = vld [vmem:[%s351 + $0x68] sm:$0xff]
        %v485 = vld [vmem:[%s351 + $0x70] sm:$0xff]
        %v486 = vld [vmem:[%s351 + $0x78] sm:$0xff]
        %s487 = scalar_lea.vmem [#allocation2], 24
        %488 = vst [vmem:[%s487 + $0x1] sm:$0xff] %v471
        %489 = vst [vmem:[%s487 + $0x9] sm:$0xff] %v472
        %490 = vst [vmem:[%s487 + $0x19] sm:$0xff] %v473
        %491 = vst [vmem:[%s487 + $0x21] sm:$0xff] %v474
        %492 = vst [vmem:[%s487 + $0x31] sm:$0xff] %v475
        %493 = vst [vmem:[%s487 + $0x39] sm:$0xff] %v476
        %494 = vst [vmem:[%s487 + $0x49] sm:$0xff] %v477
        %495 = vst [vmem:[%s487 + $0x51] sm:$0xff] %v478
        %496 = vst [vmem:[%s487 + $0x61] sm:$0xff] %v479
        %497 = vst [vmem:[%s487 + $0x69] sm:$0xff] %v480
        %498 = vst [vmem:[%s487 + $0x79] sm:$0xff] %v481
        %499 = vst [vmem:[%s487 + $0x81] sm:$0xff] %v482
        %500 = vst [vmem:[%s487 + $0x91] sm:$0xff] %v483
        %501 = vst [vmem:[%s487 + $0x99] sm:$0xff] %v484
        %502 = vst [vmem:[%s487 + $0xa9] sm:$0xff] %v485
        %503 = vst [vmem:[%s487 + $0xb1] sm:$0xff] %v486
        %v504 = vld [vmem:[%s425] sm:$0xff]
        %v505 = vld [vmem:[%s425 + $0x8] sm:$0x1]
        %v506 = vld [vmem:[%s428] sm:$0x1]
        %v507 = vld [vmem:[#allocation2] sm:$0xff]
        %v508 = vld [vmem:[#allocation2 + $0x8] sm:$0xff]
        %v509 = vld [vmem:[#allocation2 + $0x18] sm:$0xff]
        %v510 = vld [vmem:[#allocation2 + $0x20] sm:$0xff]
        %v511 = vld [vmem:[#allocation2 + $0x30] sm:$0xff]
        %v512 = vld [vmem:[#allocation2 + $0x38] sm:$0xff]
        %v513 = vld [vmem:[#allocation2 + $0x48] sm:$0xff]
        %v514 = vld [vmem:[#allocation2 + $0x50] sm:$0xff]
        %v515 = vld [vmem:[#allocation2 + $0x60] sm:$0xff]
        %v516 = vld [vmem:[#allocation2 + $0x68] sm:$0xff]
        %v517 = vld [vmem:[#allocation2 + $0x78] sm:$0xff]
        %v518 = vld [vmem:[#allocation2 + $0x80] sm:$0xff]
        %v519 = vld [vmem:[#allocation2 + $0x90] sm:$0xff]
        %v520 = vld [vmem:[#allocation2 + $0x98] sm:$0xff]
        %v521 = vld [vmem:[#allocation2 + $0xa8] sm:$0xff]
        %v522 = vld [vmem:[#allocation2 + $0xb0] sm:$0xff]
        %v523 = vlaneseq
        %v524 = vshrl.u32 %v523, 7
        %v525 = vsub.s32 0, %v524
        %v526 = vrot.slane %v504, %v525
        %v527 = vmul.f32 %v507, %v526
        %v528 = vmul.f32 %v508, %v526
        %v529 = vmul.f32 %v509, %v526
        %v530 = vmul.f32 %v510, %v526
        %v531 = vmul.f32 %v511, %v526
        %v532 = vmul.f32 %v512, %v526
        %v533 = vmul.f32 %v513, %v526
        %v534 = vmul.f32 %v514, %v526
        %v535 = vmul.f32 %v515, %v526
        %v536 = vmul.f32 %v516, %v526
        %v537 = vmul.f32 %v517, %v526
        %v538 = vmul.f32 %v518, %v526
        %v539 = vmul.f32 %v519, %v526
        %v540 = vmul.f32 %v520, %v526
        %v541 = vmul.f32 %v521, %v526
        %v542 = vmul.f32 %v522, %v526
        %v543 = vadd.f32 %v527, 0.0
        %v544 = vadd.f32 %v528, 0.0
        %v545 = vadd.f32 %v529, 0.0
        %v546 = vadd.f32 %v530, 0.0
        %v547 = vadd.f32 %v531, 0.0
        %v548 = vadd.f32 %v532, 0.0
        %v549 = vadd.f32 %v533, 0.0
        %v550 = vadd.f32 %v534, 0.0
        %v551 = vadd.f32 %v535, 0.0
        %v552 = vadd.f32 %v536, 0.0
        %v553 = vadd.f32 %v537, 0.0
        %v554 = vadd.f32 %v538, 0.0
        %v555 = vadd.f32 %v539, 0.0
        %v556 = vadd.f32 %v540, 0.0
        %v557 = vadd.f32 %v541, 0.0
        %v558 = vadd.f32 %v542, 0.0
        %v559 = vld [vmem:[#allocation2 + $0x1] sm:$0xff]
        %v560 = vld [vmem:[#allocation2 + $0x9] sm:$0xff]
        %v561 = vld [vmem:[#allocation2 + $0x19] sm:$0xff]
        %v562 = vld [vmem:[#allocation2 + $0x21] sm:$0xff]
        %v563 = vld [vmem:[#allocation2 + $0x31] sm:$0xff]
        %v564 = vld [vmem:[#allocation2 + $0x39] sm:$0xff]
        %v565 = vld [vmem:[#allocation2 + $0x49] sm:$0xff]
        %v566 = vld [vmem:[#allocation2 + $0x51] sm:$0xff]
        %v567 = vld [vmem:[#allocation2 + $0x61] sm:$0xff]
        %v568 = vld [vmem:[#allocation2 + $0x69] sm:$0xff]
        %v569 = vld [vmem:[#allocation2 + $0x79] sm:$0xff]
        %v570 = vld [vmem:[#allocation2 + $0x81] sm:$0xff]
        %v571 = vld [vmem:[#allocation2 + $0x91] sm:$0xff]
        %v572 = vld [vmem:[#allocation2 + $0x99] sm:$0xff]
        %v573 = vld [vmem:[#allocation2 + $0xa9] sm:$0xff]
        %v574 = vld [vmem:[#allocation2 + $0xb1] sm:$0xff]
        %v575 = vlaneseq
        %v576 = vshrl.u32 %v575, 7
        %v577 = vsub.s32 1, %v576
        %v578 = vrot.slane %v504, %v577
        %v579 = vmul.f32 %v559, %v578
        %v580 = vmul.f32 %v560, %v578
        %v581 = vmul.f32 %v561, %v578
        %v582 = vmul.f32 %v562, %v578
        %v583 = vmul.f32 %v563, %v578
        %v584 = vmul.f32 %v564, %v578
        %v585 = vmul.f32 %v565, %v578
        %v586 = vmul.f32 %v566, %v578
        %v587 = vmul.f32 %v567, %v578
        %v588 = vmul.f32 %v568, %v578
        %v589 = vmul.f32 %v569, %v578
        %v590 = vmul.f32 %v570, %v578
        %v591 = vmul.f32 %v571, %v578
        %v592 = vmul.f32 %v572, %v578
        %v593 = vmul.f32 %v573, %v578
        %v594 = vmul.f32 %v574, %v578
        %v595 = vadd.f32 %v543, %v579
        %v596 = vadd.f32 %v544, %v580
        %v597 = vadd.f32 %v545, %v581
        %v598 = vadd.f32 %v546, %v582
        %v599 = vadd.f32 %v547, %v583
        %v600 = vadd.f32 %v548, %v584
        %v601 = vadd.f32 %v549, %v585
        %v602 = vadd.f32 %v550, %v586
        %v603 = vadd.f32 %v551, %v587
        %v604 = vadd.f32 %v552, %v588
        %v605 = vadd.f32 %v553, %v589
        %v606 = vadd.f32 %v554, %v590
        %v607 = vadd.f32 %v555, %v591
        %v608 = vadd.f32 %v556, %v592
        %v609 = vadd.f32 %v557, %v593
        %v610 = vadd.f32 %v558, %v594
        %v611 = vld [vmem:[#allocation2 + $0x2] sm:$0xff]
        %v612 = vld [vmem:[#allocation2 + $0xa] sm:$0xff]
        %v613 = vld [vmem:[#allocation2 + $0x1a] sm:$0xff]
        %v614 = vld [vmem:[#allocation2 + $0x22] sm:$0xff]
        %v615 = vld [vmem:[#allocation2 + $0x32] sm:$0xff]
        %v616 = vld [vmem:[#allocation2 + $0x3a] sm:$0xff]
        %v617 = vld [vmem:[#allocation2 + $0x4a] sm:$0xff]
        %v618 = vld [vmem:[#allocation2 + $0x52] sm:$0xff]
        %v619 = vld [vmem:[#allocation2 + $0x62] sm:$0xff]
        %v620 = vld [vmem:[#allocation2 + $0x6a] sm:$0xff]
        %v621 = vld [vmem:[#allocation2 + $0x7a] sm:$0xff]
        %v622 = vld [vmem:[#allocation2 + $0x82] sm:$0xff]
        %v623 = vld [vmem:[#allocation2 + $0x92] sm:$0xff]
        %v624 = vld [vmem:[#allocation2 + $0x9a] sm:$0xff]
        %v625 = vld [vmem:[#allocation2 + $0xaa] sm:$0xff]
        %v626 = vld [vmem:[#allocation2 + $0xb2] sm:$0xff]
        %v627 = vlaneseq
        %v628 = vshrl.u32 %v627, 7
        %v629 = vsub.s32 2, %v628
        %v630 = vrot.slane %v504, %v629
        %v631 = vmul.f32 %v611, %v630
        %v632 = vmul.f32 %v612, %v630
        %v633 = vmul.f32 %v613, %v630
        %v634 = vmul.f32 %v614, %v630
        %v635 = vmul.f32 %v615, %v630
        %v636 = vmul.f32 %v616, %v630
        %v637 = vmul.f32 %v617, %v630
        %v638 = vmul.f32 %v618, %v630
        %v639 = vmul.f32 %v619, %v630
        %v640 = vmul.f32 %v620, %v630
        %v641 = vmul.f32 %v621, %v630
        %v642 = vmul.f32 %v622, %v630
        %v643 = vmul.f32 %v623, %v630
        %v644 = vmul.f32 %v624, %v630
        %v645 = vmul.f32 %v625, %v630
        %v646 = vmul.f32 %v626, %v630
        %v647 = vadd.f32 %v595, %v631
        %v648 = vadd.f32 %v596, %v632
        %v649 = vadd.f32 %v597, %v633
        %v650 = vadd.f32 %v598, %v634
        %v651 = vadd.f32 %v599, %v635
        %v652 = vadd.f32 %v600, %v636
        %v653 = vadd.f32 %v601, %v637
        %v654 = vadd.f32 %v602, %v638
        %v655 = vadd.f32 %v603, %v639
        %v656 = vadd.f32 %v604, %v640
        %v657 = vadd.f32 %v605, %v641
        %v658 = vadd.f32 %v606, %v642
        %v659 = vadd.f32 %v607, %v643
        %v660 = vadd.f32 %v608, %v644
        %v661 = vadd.f32 %v609, %v645
        %v662 = vadd.f32 %v610, %v646
        %v663 = vld [vmem:[%s487] sm:$0xff]
        %v664 = vld [vmem:[%s487 + $0x8] sm:$0xff]
        %v665 = vld [vmem:[%s487 + $0x18] sm:$0xff]
        %v666 = vld [vmem:[%s487 + $0x20] sm:$0xff]
        %v667 = vld [vmem:[%s487 + $0x30] sm:$0xff]
        %v668 = vld [vmem:[%s487 + $0x38] sm:$0xff]
        %v669 = vld [vmem:[%s487 + $0x48] sm:$0xff]
        %v670 = vld [vmem:[%s487 + $0x50] sm:$0xff]
        %v671 = vld [vmem:[%s487 + $0x60] sm:$0xff]
        %v672 = vld [vmem:[%s487 + $0x68] sm:$0xff]
        %v673 = vld [vmem:[%s487 + $0x78] sm:$0xff]
        %v674 = vld [vmem:[%s487 + $0x80] sm:$0xff]
        %v675 = vld [vmem:[%s487 + $0x90] sm:$0xff]
        %v676 = vld [vmem:[%s487 + $0x98] sm:$0xff]
        %v677 = vld [vmem:[%s487 + $0xa8] sm:$0xff]
        %v678 = vld [vmem:[%s487 + $0xb0] sm:$0xff]
        %v679 = vlaneseq
        %v680 = vshrl.u32 %v679, 7
        %v681 = vsub.s32 3, %v680
        %v682 = vrot.slane %v504, %v681
        %v683 = vmul.f32 %v663, %v682
        %v684 = vmul.f32 %v664, %v682
        %v685 = vmul.f32 %v665, %v682
        %v686 = vmul.f32 %v666, %v682
        %v687 = vmul.f32 %v667, %v682
        %v688 = vmul.f32 %v668, %v682
        %v689 = vmul.f32 %v669, %v682
        %v690 = vmul.f32 %v670, %v682
        %v691 = vmul.f32 %v671, %v682
        %v692 = vmul.f32 %v672, %v682
        %v693 = vmul.f32 %v673, %v682
        %v694 = vmul.f32 %v674, %v682
        %v695 = vmul.f32 %v675, %v682
        %v696 = vmul.f32 %v676, %v682
        %v697 = vmul.f32 %v677, %v682
        %v698 = vmul.f32 %v678, %v682
        %v699 = vadd.f32 %v647, %v683
        %v700 = vadd.f32 %v648, %v684
        %v701 = vadd.f32 %v649, %v685
        %v702 = vadd.f32 %v650, %v686
        %v703 = vadd.f32 %v651, %v687
        %v704 = vadd.f32 %v652, %v688
        %v705 = vadd.f32 %v653, %v689
        %v706 = vadd.f32 %v654, %v690
        %v707 = vadd.f32 %v655, %v691
        %v708 = vadd.f32 %v656, %v692
        %v709 = vadd.f32 %v657, %v693
        %v710 = vadd.f32 %v658, %v694
        %v711 = vadd.f32 %v659, %v695
        %v712 = vadd.f32 %v660, %v696
        %v713 = vadd.f32 %v661, %v697
        %v714 = vadd.f32 %v662, %v698
        %v715 = vld [vmem:[%s487 + $0x1] sm:$0xff]
        %v716 = vld [vmem:[%s487 + $0x9] sm:$0xff]
        %v717 = vld [vmem:[%s487 + $0x19] sm:$0xff]
        %v718 = vld [vmem:[%s487 + $0x21] sm:$0xff]
        %v719 = vld [vmem:[%s487 + $0x31] sm:$0xff]
        %v720 = vld [vmem:[%s487 + $0x39] sm:$0xff]
        %v721 = vld [vmem:[%s487 + $0x49] sm:$0xff]
        %v722 = vld [vmem:[%s487 + $0x51] sm:$0xff]
        %v723 = vld [vmem:[%s487 + $0x61] sm:$0xff]
        %v724 = vld [vmem:[%s487 + $0x69] sm:$0xff]
        %v725 = vld [vmem:[%s487 + $0x79] sm:$0xff]
        %v726 = vld [vmem:[%s487 + $0x81] sm:$0xff]
        %v727 = vld [vmem:[%s487 + $0x91] sm:$0xff]
        %v728 = vld [vmem:[%s487 + $0x99] sm:$0xff]
        %v729 = vld [vmem:[%s487 + $0xa9] sm:$0xff]
        %v730 = vld [vmem:[%s487 + $0xb1] sm:$0xff]
        %v731 = vlaneseq
        %v732 = vshrl.u32 %v731, 7
        %v733 = vsub.s32 4, %v732
        %v734 = vrot.slane %v504, %v733
        %v735 = vmul.f32 %v715, %v734
        %v736 = vmul.f32 %v716, %v734
        %v737 = vmul.f32 %v717, %v734
        %v738 = vmul.f32 %v718, %v734
        %v739 = vmul.f32 %v719, %v734
        %v740 = vmul.f32 %v720, %v734
        %v741 = vmul.f32 %v721, %v734
        %v742 = vmul.f32 %v722, %v734
        %v743 = vmul.f32 %v723, %v734
        %v744 = vmul.f32 %v724, %v734
        %v745 = vmul.f32 %v725, %v734
        %v746 = vmul.f32 %v726, %v734
        %v747 = vmul.f32 %v727, %v734
        %v748 = vmul.f32 %v728, %v734
        %v749 = vmul.f32 %v729, %v734
        %v750 = vmul.f32 %v730, %v734
        %v751 = vadd.f32 %v699, %v735
        %v752 = vadd.f32 %v700, %v736
        %v753 = vadd.f32 %v701, %v737
        %v754 = vadd.f32 %v702, %v738
        %v755 = vadd.f32 %v703, %v739
        %v756 = vadd.f32 %v704, %v740
        %v757 = vadd.f32 %v705, %v741
        %v758 = vadd.f32 %v706, %v742
        %v759 = vadd.f32 %v707, %v743
        %v760 = vadd.f32 %v708, %v744
        %v761 = vadd.f32 %v709, %v745
        %v762 = vadd.f32 %v710, %v746
        %v763 = vadd.f32 %v711, %v747
        %v764 = vadd.f32 %v712, %v748
        %v765 = vadd.f32 %v713, %v749
        %v766 = vadd.f32 %v714, %v750
        %v767 = vld [vmem:[%s487 + $0x2] sm:$0xff]
        %v768 = vld [vmem:[%s487 + $0xa] sm:$0xff]
        %v769 = vld [vmem:[%s487 + $0x1a] sm:$0xff]
        %v770 = vld [vmem:[%s487 + $0x22] sm:$0xff]
        %v771 = vld [vmem:[%s487 + $0x32] sm:$0xff]
        %v772 = vld [vmem:[%s487 + $0x3a] sm:$0xff]
        %v773 = vld [vmem:[%s487 + $0x4a] sm:$0xff]
        %v774 = vld [vmem:[%s487 + $0x52] sm:$0xff]
        %v775 = vld [vmem:[%s487 + $0x62] sm:$0xff]
        %v776 = vld [vmem:[%s487 + $0x6a] sm:$0xff]
        %v777 = vld [vmem:[%s487 + $0x7a] sm:$0xff]
        %v778 = vld [vmem:[%s487 + $0x82] sm:$0xff]
        %v779 = vld [vmem:[%s487 + $0x92] sm:$0xff]
        %v780 = vld [vmem:[%s487 + $0x9a] sm:$0xff]
        %v781 = vld [vmem:[%s487 + $0xaa] sm:$0xff]
        %v782 = vld [vmem:[%s487 + $0xb2] sm:$0xff]
        %v783 = vlaneseq
        %v784 = vshrl.u32 %v783, 7
        %v785 = vsub.s32 5, %v784
        %v786 = vrot.slane %v504, %v785
        %v787 = vmul.f32 %v767, %v786
        %v788 = vmul.f32 %v768, %v786
        %v789 = vmul.f32 %v769, %v786
        %v790 = vmul.f32 %v770, %v786
        %v791 = vmul.f32 %v771, %v786
        %v792 = vmul.f32 %v772, %v786
        %v793 = vmul.f32 %v773, %v786
        %v794 = vmul.f32 %v774, %v786
        %v795 = vmul.f32 %v775, %v786
        %v796 = vmul.f32 %v776, %v786
        %v797 = vmul.f32 %v777, %v786
        %v798 = vmul.f32 %v778, %v786
        %v799 = vmul.f32 %v779, %v786
        %v800 = vmul.f32 %v780, %v786
        %v801 = vmul.f32 %v781, %v786
        %v802 = vmul.f32 %v782, %v786
        %v803 = vadd.f32 %v751, %v787
        %v804 = vadd.f32 %v752, %v788
        %v805 = vadd.f32 %v753, %v789
        %v806 = vadd.f32 %v754, %v790
        %v807 = vadd.f32 %v755, %v791
        %v808 = vadd.f32 %v756, %v792
        %v809 = vadd.f32 %v757, %v793
        %v810 = vadd.f32 %v758, %v794
        %v811 = vadd.f32 %v759, %v795
        %v812 = vadd.f32 %v760, %v796
        %v813 = vadd.f32 %v761, %v797
        %v814 = vadd.f32 %v762, %v798
        %v815 = vadd.f32 %v763, %v799
        %v816 = vadd.f32 %v764, %v800
        %v817 = vadd.f32 %v765, %v801
        %v818 = vadd.f32 %v766, %v802
        %s819 = scalar_lea.vmem [#allocation2], 48
        %v820 = vld [vmem:[%s819] sm:$0xff]
        %v821 = vld [vmem:[%s819 + $0x8] sm:$0xff]
        %v822 = vld [vmem:[%s819 + $0x18] sm:$0xff]
        %v823 = vld [vmem:[%s819 + $0x20] sm:$0xff]
        %v824 = vld [vmem:[%s819 + $0x30] sm:$0xff]
        %v825 = vld [vmem:[%s819 + $0x38] sm:$0xff]
        %v826 = vld [vmem:[%s819 + $0x48] sm:$0xff]
        %v827 = vld [vmem:[%s819 + $0x50] sm:$0xff]
        %v828 = vld [vmem:[%s819 + $0x60] sm:$0xff]
        %v829 = vld [vmem:[%s819 + $0x68] sm:$0xff]
        %v830 = vld [vmem:[%s819 + $0x78] sm:$0xff]
        %v831 = vld [vmem:[%s819 + $0x80] sm:$0xff]
        %v832 = vld [vmem:[%s819 + $0x90] sm:$0xff]
        %v833 = vld [vmem:[%s819 + $0x98] sm:$0xff]
        %v834 = vld [vmem:[%s819 + $0xa8] sm:$0xff]
        %v835 = vld [vmem:[%s819 + $0xb0] sm:$0xff]
        %v836 = vlaneseq
        %v837 = vshrl.u32 %v836, 7
        %v838 = vsub.s32 6, %v837
        %v839 = vrot.slane %v504, %v838
        %v840 = vmul.f32 %v820, %v839
        %v841 = vmul.f32 %v821, %v839
        %v842 = vmul.f32 %v822, %v839
        %v843 = vmul.f32 %v823, %v839
        %v844 = vmul.f32 %v824, %v839
        %v845 = vmul.f32 %v825, %v839
        %v846 = vmul.f32 %v826, %v839
        %v847 = vmul.f32 %v827, %v839
        %v848 = vmul.f32 %v828, %v839
        %v849 = vmul.f32 %v829, %v839
        %v850 = vmul.f32 %v830, %v839
        %v851 = vmul.f32 %v831, %v839
        %v852 = vmul.f32 %v832, %v839
        %v853 = vmul.f32 %v833, %v839
        %v854 = vmul.f32 %v834, %v839
        %v855 = vmul.f32 %v835, %v839
        %v856 = vadd.f32 %v803, %v840
        %v857 = vadd.f32 %v804, %v841
        %v858 = vadd.f32 %v805, %v842
        %v859 = vadd.f32 %v806, %v843
        %v860 = vadd.f32 %v807, %v844
        %v861 = vadd.f32 %v808, %v845
        %v862 = vadd.f32 %v809, %v846
        %v863 = vadd.f32 %v810, %v847
        %v864 = vadd.f32 %v811, %v848
        %v865 = vadd.f32 %v812, %v849
        %v866 = vadd.f32 %v813, %v850
        %v867 = vadd.f32 %v814, %v851
        %v868 = vadd.f32 %v815, %v852
        %v869 = vadd.f32 %v816, %v853
        %v870 = vadd.f32 %v817, %v854
        %v871 = vadd.f32 %v818, %v855
        %v872 = vld [vmem:[%s819 + $0x1] sm:$0xff]
        %v873 = vld [vmem:[%s819 + $0x9] sm:$0xff]
        %v874 = vld [vmem:[%s819 + $0x19] sm:$0xff]
        %v875 = vld [vmem:[%s819 + $0x21] sm:$0xff]
        %v876 = vld [vmem:[%s819 + $0x31] sm:$0xff]
        %v877 = vld [vmem:[%s819 + $0x39] sm:$0xff]
        %v878 = vld [vmem:[%s819 + $0x49] sm:$0xff]
        %v879 = vld [vmem:[%s819 + $0x51] sm:$0xff]
        %v880 = vld [vmem:[%s819 + $0x61] sm:$0xff]
        %v881 = vld [vmem:[%s819 + $0x69] sm:$0xff]
        %v882 = vld [vmem:[%s819 + $0x79] sm:$0xff]
        %v883 = vld [vmem:[%s819 + $0x81] sm:$0xff]
        %v884 = vld [vmem:[%s819 + $0x91] sm:$0xff]
        %v885 = vld [vmem:[%s819 + $0x99] sm:$0xff]
        %v886 = vld [vmem:[%s819 + $0xa9] sm:$0xff]
        %v887 = vld [vmem:[%s819 + $0xb1] sm:$0xff]
        %v888 = vlaneseq
        %v889 = vshrl.u32 %v888, 7
        %v890 = vsub.s32 7, %v889
        %v891 = vrot.slane %v504, %v890
        %v892 = vmul.f32 %v872, %v891
        %v893 = vmul.f32 %v873, %v891
        %v894 = vmul.f32 %v874, %v891
        %v895 = vmul.f32 %v875, %v891
        %v896 = vmul.f32 %v876, %v891
        %v897 = vmul.f32 %v877, %v891
        %v898 = vmul.f32 %v878, %v891
        %v899 = vmul.f32 %v879, %v891
        %v900 = vmul.f32 %v880, %v891
        %v901 = vmul.f32 %v881, %v891
        %v902 = vmul.f32 %v882, %v891
        %v903 = vmul.f32 %v883, %v891
        %v904 = vmul.f32 %v884, %v891
        %v905 = vmul.f32 %v885, %v891
        %v906 = vmul.f32 %v886, %v891
        %v907 = vmul.f32 %v887, %v891
        %v908 = vadd.f32 %v856, %v892
        %v909 = vadd.f32 %v857, %v893
        %v910 = vadd.f32 %v858, %v894
        %v911 = vadd.f32 %v859, %v895
        %v912 = vadd.f32 %v860, %v896
        %v913 = vadd.f32 %v861, %v897
        %v914 = vadd.f32 %v862, %v898
        %v915 = vadd.f32 %v863, %v899
        %v916 = vadd.f32 %v864, %v900
        %v917 = vadd.f32 %v865, %v901
        %v918 = vadd.f32 %v866, %v902
        %v919 = vadd.f32 %v867, %v903
        %v920 = vadd.f32 %v868, %v904
        %v921 = vadd.f32 %v869, %v905
        %v922 = vadd.f32 %v870, %v906
        %v923 = vadd.f32 %v871, %v907
        %v924 = vld [vmem:[%s819 + $0x2] sm:$0xff]
        %v925 = vld [vmem:[%s819 + $0xa] sm:$0xff]
        %v926 = vld [vmem:[%s819 + $0x1a] sm:$0xff]
        %v927 = vld [vmem:[%s819 + $0x22] sm:$0xff]
        %v928 = vld [vmem:[%s819 + $0x32] sm:$0xff]
        %v929 = vld [vmem:[%s819 + $0x3a] sm:$0xff]
        %v930 = vld [vmem:[%s819 + $0x4a] sm:$0xff]
        %v931 = vld [vmem:[%s819 + $0x52] sm:$0xff]
        %v932 = vld [vmem:[%s819 + $0x62] sm:$0xff]
        %v933 = vld [vmem:[%s819 + $0x6a] sm:$0xff]
        %v934 = vld [vmem:[%s819 + $0x7a] sm:$0xff]
        %v935 = vld [vmem:[%s819 + $0x82] sm:$0xff]
        %v936 = vld [vmem:[%s819 + $0x92] sm:$0xff]
        %v937 = vld [vmem:[%s819 + $0x9a] sm:$0xff]
        %v938 = vld [vmem:[%s819 + $0xaa] sm:$0xff]
        %v939 = vld [vmem:[%s819 + $0xb2] sm:$0xff]
        %v940 = vlaneseq
        %v941 = vshrl.u32 %v940, 7
        %v942 = vsub.s32 0, %v941
        %v943 = vrot.slane %v505, %v942
        %v944 = vmul.f32 %v924, %v943
        %v945 = vmul.f32 %v925, %v943
        %v946 = vmul.f32 %v926, %v943
        %v947 = vmul.f32 %v927, %v943
        %v948 = vmul.f32 %v928, %v943
        %v949 = vmul.f32 %v929, %v943
        %v950 = vmul.f32 %v930, %v943
        %v951 = vmul.f32 %v931, %v943
        %v952 = vmul.f32 %v932, %v943
        %v953 = vmul.f32 %v933, %v943
        %v954 = vmul.f32 %v934, %v943
        %v955 = vmul.f32 %v935, %v943
        %v956 = vmul.f32 %v936, %v943
        %v957 = vmul.f32 %v937, %v943
        %v958 = vmul.f32 %v938, %v943
        %v959 = vmul.f32 %v939, %v943
        %v960 = vadd.f32 %v908, %v944
        %v961 = vadd.f32 %v909, %v945
        %v962 = vadd.f32 %v910, %v946
        %v963 = vadd.f32 %v911, %v947
        %v964 = vadd.f32 %v912, %v948
        %v965 = vadd.f32 %v913, %v949
        %v966 = vadd.f32 %v914, %v950
        %v967 = vadd.f32 %v915, %v951
        %v968 = vadd.f32 %v916, %v952
        %v969 = vadd.f32 %v917, %v953
        %v970 = vadd.f32 %v918, %v954
        %v971 = vadd.f32 %v919, %v955
        %v972 = vadd.f32 %v920, %v956
        %v973 = vadd.f32 %v921, %v957
        %v974 = vadd.f32 %v922, %v958
        %v975 = vadd.f32 %v923, %v959
        %v977 = vlaneseq
        %v978 = vshrl.u32 %v977, 7
        %v979 = vsub.s32 0, %v978
        %v980 = vrot.slane %v506, %v979
        %v982 = vadd.f32 %v960, %v980
        %v983 = vadd.f32 %v961, %v980
        %v984 = vadd.f32 %v962, %v980
        %v985 = vadd.f32 %v963, %v980
        %v986 = vadd.f32 %v964, %v980
        %v987 = vadd.f32 %v965, %v980
        %v988 = vadd.f32 %v966, %v980
        %v989 = vadd.f32 %v967, %v980
        %v990 = vadd.f32 %v968, %v980
        %v991 = vadd.f32 %v969, %v980
        %v992 = vadd.f32 %v970, %v980
        %v993 = vadd.f32 %v971, %v980
        %v994 = vadd.f32 %v972, %v980
        %v995 = vadd.f32 %v973, %v980
        %v996 = vadd.f32 %v974, %v980
        %v997 = vadd.f32 %v975, %v980
        %998 = vst [vmem:[%s412] sm:$0xff] %v982
        %999 = vst [vmem:[%s412 + $0x8] sm:$0xff] %v983
        %1000 = vst [vmem:[%s412 + $0x10] sm:$0xff] %v984
        %1001 = vst [vmem:[%s412 + $0x18] sm:$0xff] %v985
        %1002 = vst [vmem:[%s412 + $0x20] sm:$0xff] %v986
        %1003 = vst [vmem:[%s412 + $0x28] sm:$0xff] %v987
        %1004 = vst [vmem:[%s412 + $0x30] sm:$0xff] %v988
        %1005 = vst [vmem:[%s412 + $0x38] sm:$0xff] %v989
        %1006 = vst [vmem:[%s412 + $0x40] sm:$0xff] %v990
        %1007 = vst [vmem:[%s412 + $0x48] sm:$0xff] %v991
        %1008 = vst [vmem:[%s412 + $0x50] sm:$0xff] %v992
        %1009 = vst [vmem:[%s412 + $0x58] sm:$0xff] %v993
        %1010 = vst [vmem:[%s412 + $0x60] sm:$0xff] %v994
        %1011 = vst [vmem:[%s412 + $0x68] sm:$0xff] %v995
        %1012 = vst [vmem:[%s412 + $0x70] sm:$0xff] %v996
        %1013 = vst [vmem:[%s412 + $0x78] sm:$0xff] %v997
        %s1014 = sand.u32 %s214, 1
        %s1015 = scalar_lea.sflag [#allocation5], %s1014
        %s1016 = sand.u32 %s214, 1
        %s1017 = smul.addr %s1016, 128
        %s1018 = scalar_lea.vmem [#allocation9], %s1017
        // Predicated region
        $region53: #{dwconv_forward.1} parent=39 // pred_check
          %p1019 = pneg %p224
        $region54: #{dwconv_forward.1} parent=39 // pred_check_branch
          %1021 = sbr.rel (%p1019) target = $region56
        $region55: #{dwconv_forward.1} parent=39 // pred_region
          %s1022 = smul.u32 8, %s31
          %s1024 = ssub.s32 2048, 2048
          %1025 = vsyncadd %s1015, %s1024
          %s1026 = smul.addr %s1022, 2
          %s1027 = sadd.s32 %s32, %s1026
          %s1028 = smul.addr %s30, 32
          %s1029 = sadd.s32 %s1027, %s1028
          %s1030 = smul.addr %s1029, 128
          %s1031 = scalar_lea.hbm %s5, %s1030
          %s1032 = sshll.u32 %s1018, 4
          %s1033 = int_to_ptr.vmem [resolvable:$true] %s1032
          %1038 = dma.vmem_to_hbm [thread:$0]  %s1033, 2048, %s1031, %s1015, 128, 128, 8
        $region56: #{dwconv_forward.1} parent=39 // pred_fallthru
          _
      $region40: #{dwconv_forward.1} parent=5 // pred_fallthru
        _
      %p1039 = scmp.le.s32.totalorder 2, %s20
      // Predicated region
      $region57: #{dwconv_forward.1} parent=5 // pred_check
        %p1040 = pneg %p1039
      $region58: #{dwconv_forward.1} parent=5 // pred_check_branch
        %1042 = sbr.rel (%p1040) target = $region60
      $region59: #{dwconv_forward.1} parent=5 // pred_region
        %s1043 = ssub.s32 %s20, 2
        // Predicated region
        $region61: #{dwconv_forward.1} parent=59 // pred_check
          %p1044 = pneg %p230
        $region62: #{dwconv_forward.1} parent=59 // pred_check_branch
          %1046 = sbr.rel (%p1044) target = $region64
        $region63: #{dwconv_forward.1} parent=59 // pred_region
          %s1047 = sand.u32 %s215, 1
          %s1048 = scalar_lea.sflag [#allocation5], %s1047
          %s1049 = sand.u32 %s215, 1
          %s1050 = smul.addr %s1049, 128
          %s1051 = scalar_lea.vmem [#allocation9], %s1050
          %1052 = dma.done %s1048, 2048
        $region64: #{dwconv_forward.1} parent=59 // pred_fallthru
          _
      $region60: #{dwconv_forward.1} parent=5 // pred_fallthru
        _
    $region6: #{dwconv_forward.1} parent=1 // loop_footer
      %s24 = sadd.s32 1, %s20
    $region7: #{dwconv_forward.1} parent=1 // loop_footer_branch
      %19 = sbr.rel target = $region3
    $region8: #{dwconv_forward.1} parent=1 // loop_exit
      _
    %1053 = vsyncpa [#allocation4], 1
    %s1054 = scalar_lea.sflag [#allocation4], 1
    %1055 = vsyncpa %s1054, 1
    %1056 = vsyncpa [#allocation7], 1
    %s1057 = scalar_lea.sflag [#allocation7], 1
    %1058 = vsyncpa %s1057, 1
    %1059 = vsyncpa [#allocation5], 1
    %s1060 = scalar_lea.sflag [#allocation5], 1
    %1061 = vsyncpa %s1060, 1

</llo_original>
